<compile_context>
chip_gen: v6e
topology: v6e:2x2x1
jax: 0.10.0
libtpu: 0.0.40
codegen_flags: <defaults>
</compile_context>

<pallas_src>
import functools

import jax
import jax.numpy as jnp
from jax import lax
from jax.experimental import pallas as pl
from jax.experimental.pallas import tpu as pltpu

NEG_BIG = -9e15


# ----------------------------- Pallas kernel ------------------------------ #
def fused_gat_layer_kernel(h_blk_ref, h_all_ref, adj_ref, w_all_ref,
                           a1_ref, a2_ref, out_ref,
                           *, alpha, activation, num_heads, out_dim):
    h_blk = h_blk_ref[...]                          # (TM, in_dim)  rows of this block
    h_all = h_all_ref[...]                          # (N,  in_dim)  all nodes (resident)
    adj_f = adj_ref[...].astype(jnp.float32)        # (TM, N)       int8 mask -> f32

    # One lane-wide MXU matmul for every head's Wh (heads concatenated on lanes).
    wh_all = jnp.dot(h_all, w_all_ref[...],
                     preferred_element_type=jnp.float32)           # (N, H*out)
    # a1/a2 folded into the projection:  f1 = h @ (W a1),  f2 = h @ (W a2).
    f1_all = jnp.dot(h_blk, a1_ref[...],
                     preferred_element_type=jnp.float32)           # (TM, H)
    f2_all = jnp.dot(h_all, a2_ref[...],
                     preferred_element_type=jnp.float32)           # (N, H)

    tm = h_blk.shape[0]
    ones_col = jnp.ones((tm, 1), dtype=jnp.float32)
    inv_h = 1.0 / num_heads
    acc = jnp.zeros((tm, out_dim), dtype=jnp.float32)

    for k in range(num_heads):                      # static unrolled head loop
        wh_k = wh_all[:, k * out_dim:(k + 1) * out_dim]            # (N, out)
        f1_k = f1_all[:, k:k + 1]                                  # (TM, 1)
        f2_k = f2_all[:, k:k + 1]                                  # (N, 1)

        # Broadcast f2_j across rows with a cheap K=1 outer product.
        e2 = lax.dot_general(ones_col, f2_k, (((1,), (1,)), ((), ())),
                             preferred_element_type=jnp.float32)   # (TM, N)
        e = f1_k + e2
        e = jnp.where(e > 0, e, alpha * e)                         # LeakyReLU
        e = jnp.where(adj_f > 0.0, e, NEG_BIG)                     # mask non-edges

        # row-wise softmax with deferred normalisation
        m = jnp.max(e, axis=1, keepdims=True)
        p = jnp.exp(e - m)
        s = jnp.sum(p, axis=1, keepdims=True)
        hp = jnp.dot(p, wh_k, preferred_element_type=jnp.float32)  # (TM, out)
        hp = hp * pl.reciprocal(s, approx=False)                   # exact (tolerance)

        if activation == "elu":
            hp = jnp.where(hp > 0, hp, jnp.exp(hp) - 1.0)
        elif activation == "relu":
            hp = jnp.maximum(hp, 0.0)
        acc = acc + hp * inv_h                                     # fused head-mean

    out_ref[...] = acc


def gat_multihead_layer(h, adj_i8, heads, *, alpha, activation):
    """One fused multi-head GAT layer (incl. head-mean) as a single pallas_call."""
    N, in_dim = h.shape
    out_dim = heads[0][0].shape[1]
    H = len(heads)

    # Lane-concatenate per-head weights; fold a1/a2 into the projection.
    w_all = jnp.concatenate([W for (W, _) in heads], axis=1)               # (in, H*out)
    a1 = jnp.concatenate([W @ a[:out_dim] for (W, a) in heads], axis=1)    # (in, H)
    a2 = jnp.concatenate([W @ a[out_dim:] for (W, a) in heads], axis=1)    # (in, H)

    # Row-block tiling: only a (TM, N) attention tile lives in VMEM, and the
    # row axis is "parallel" so it shards across v7x's two TensorCores.
    tm = 128 if (N % 128 == 0) else N
    grid = (N // tm,)

    kern = functools.partial(fused_gat_layer_kernel, alpha=alpha,
                             activation=activation, num_heads=H, out_dim=out_dim)
    return pl.pallas_call(
        kern,
        out_shape=jax.ShapeDtypeStruct((N, out_dim), jnp.float32),
        grid=grid,
        in_specs=[
            pl.BlockSpec((tm, in_dim), lambda i: (i, 0)),        # h rows of this block
            pl.BlockSpec((N, in_dim), lambda i: (0, 0)),         # full h (resident)
            pl.BlockSpec((tm, N), lambda i: (i, 0)),             # adj rows (int8)
            pl.BlockSpec((in_dim, H * out_dim), lambda i: (0, 0)),
            pl.BlockSpec((in_dim, H), lambda i: (0, 0)),
            pl.BlockSpec((in_dim, H), lambda i: (0, 0)),
        ],
        out_specs=pl.BlockSpec((tm, out_dim), lambda i: (i, 0)),
        compiler_params=pltpu.CompilerParams(
            dimension_semantics=("parallel",),
            vmem_limit_bytes=64 * 1024 * 1024),
    )(h, h, adj_i8, w_all, a1, a2)


# ------------------------- Event_GAT forward (glue) ------------------------ #
def event_gat_forward(x, adj_i8, params, *, alpha):
    for head_params in params["layers"]:
        # ELU per head + head-mean fused inside one kernel call per layer.
        x = gat_multihead_layer(x, adj_i8, head_params,
                                alpha=alpha, activation="elu")
        # TODO(synk): nn.Dropout(args.dropout) treated as eval-mode identity.
    return gat_multihead_layer(x, adj_i8, [params["out"]],
                               alpha=alpha, activation="relu")


# ----------------------------- pure-JAX reference -------------------------- #
def gat_layer_ref(h, adj, W, a, alpha, activation):
    out_dim = W.shape[1]
    wh = h @ W
    f1 = wh @ a[:out_dim]
    f2 = wh @ a[out_dim:]
    e = jax.nn.leaky_relu(f1 + f2.T, negative_slope=alpha)
    e = jnp.where(adj > 0, e, NEG_BIG)
    att = jax.nn.softmax(e, axis=1)
    hp = att @ wh
    if activation == "elu":
        hp = jax.nn.elu(hp)
    elif activation == "relu":
        hp = jnp.maximum(hp, 0.0)
    return hp


def event_gat_ref(x, adj, params, alpha):
    for head_params in params["layers"]:
        heads = [gat_layer_ref(x, adj, W, a, alpha, "elu") for (W, a) in head_params]
        x = jnp.mean(jnp.stack(heads, axis=1), axis=1)
    W, a = params["out"]
    return gat_layer_ref(x, adj, W, a, alpha, "relu")


# ----------------------------------- main ---------------------------------- #
def xavier_uniform(key, shape):
    fan_in, fan_out = shape[0], shape[1]
    limit = (6.0 / (fan_in + fan_out)) ** 0.5
    return jax.random.uniform(key, shape, jnp.float32, -limit, limit)


if __name__ == "__main__":
    N, in_dim, out_dim = 16, 8, 8
    layer_num, head_num = 2, 2
    alpha = 0.2  # args.alpha for LeakyReLU

    key = jax.random.PRNGKey(0)
    k_x, k_adj, k_p = jax.random.split(key, 3)

    x = jax.random.normal(k_x, (N, in_dim), dtype=jnp.float32)
    adj = (jax.random.uniform(k_adj, (N, N)) > 0.6).astype(jnp.float32)
    adj = jnp.clip(adj + jnp.eye(N, dtype=jnp.float32), 0.0, 1.0)  # self-loops
    adj_i8 = (adj > 0).astype(jnp.int8)   # compact mask shipped to the kernel

    # Deterministic parameter init (xavier-uniform, shapes from __init__).
    params = {"layers": [], "out": None}
    dim_in = in_dim
    pk = k_p
    for _ in range(layer_num - 1):
        heads = []
        for _ in range(head_num):
            pk, kw, ka = jax.random.split(pk, 3)
            heads.append((xavier_uniform(kw, (dim_in, out_dim)),
                          xavier_uniform(ka, (2 * out_dim, 1))))
        params["layers"].append(heads)
        dim_in = out_dim
    pk, kw, ka = jax.random.split(pk, 3)
    params["out"] = (xavier_uniform(kw, (dim_in, out_dim)),
                     xavier_uniform(ka, (2 * out_dim, 1)))

    out = event_gat_forward(x, adj_i8, params, alpha=alpha)
    out = jax.block_until_ready(out)

    ref = event_gat_ref(x, adj, params, alpha=alpha)
    assert out.shape == (N, out_dim)
    assert jnp.allclose(out, ref, atol=1e-4, rtol=1e-4), "mismatch vs JAX reference"

    print("KERNEL_OK")
</pallas_src>

<mosaic_0001>
module attributes {stable_mosaic.version = 11 : i64} {
  func.func @fused_gat_layer_kernel(%arg0: i32, %arg1: memref<16x8xf32, #tpu.memory_space<vmem>>, %arg2: memref<16x8xf32, #tpu.memory_space<vmem>>, %arg3: memref<16x16xi8, #tpu.memory_space<vmem>>, %arg4: memref<8x16xf32, #tpu.memory_space<vmem>>, %arg5: memref<8x2xf32, #tpu.memory_space<vmem>>, %arg6: memref<8x2xf32, #tpu.memory_space<vmem>>, %arg7: memref<16x8xf32, #tpu.memory_space<vmem>>) attributes {dimension_semantics = [#tpu.dimension_semantics<parallel>], iteration_bounds = array<i64: 1>, scalar_prefetch = 0 : i64, scratch_operands = 0 : i64, tpu.core_type = #tpu.core_type<tc>, window_params = [{transform_indices = @transform_0, window_bounds = array<i64: 16, 8>}, {pipeline_mode = #tpu.pipeline_mode<synchronous>, transform_indices = @transform_1, window_bounds = array<i64: 16, 8>}, {transform_indices = @transform_2, window_bounds = array<i64: 16, 16>}, {pipeline_mode = #tpu.pipeline_mode<synchronous>, transform_indices = @transform_3, window_bounds = array<i64: 8, 16>}, {pipeline_mode = #tpu.pipeline_mode<synchronous>, transform_indices = @transform_4, window_bounds = array<i64: 8, 2>}, {pipeline_mode = #tpu.pipeline_mode<synchronous>, transform_indices = @transform_5, window_bounds = array<i64: 8, 2>}, {transform_indices = @transform_6, window_bounds = array<i64: 16, 8>}]} {
    %c0 = arith.constant 0 : index
    %c0_0 = arith.constant 0 : index
    %0 = vector.load %arg1[%c0, %c0_0] : memref<16x8xf32, #tpu.memory_space<vmem>>, vector<16x8xf32>
    %c0_1 = arith.constant 0 : index
    %c0_2 = arith.constant 0 : index
    %1 = vector.load %arg2[%c0_1, %c0_2] : memref<16x8xf32, #tpu.memory_space<vmem>>, vector<16x8xf32>
    %c0_3 = arith.constant 0 : index
    %c0_4 = arith.constant 0 : index
    %2 = vector.load %arg3[%c0_3, %c0_4] : memref<16x16xi8, #tpu.memory_space<vmem>>, vector<16x16xi8>
    %3 = arith.sitofp %2 : vector<16x16xi8> to vector<16x16xf32>
    %c0_5 = arith.constant 0 : index
    %c0_6 = arith.constant 0 : index
    %4 = vector.load %arg4[%c0_5, %c0_6] : memref<8x16xf32, #tpu.memory_space<vmem>>, vector<8x16xf32>
    %cst = arith.constant dense<0.000000e+00> : vector<16x16xf32>
    %5 = tpu.matmul %1, %4, %cst {dimension_numbers = #tpu.dot_dimension_numbers<[1], [0], [0], [1], [0, 0, 1, 1], [], []>} : vector<16x8xf32>, vector<8x16xf32>, vector<16x16xf32> -> vector<16x16xf32>
    %c0_7 = arith.constant 0 : index
    %c0_8 = arith.constant 0 : index
    %6 = vector.load %arg5[%c0_7, %c0_8] : memref<8x2xf32, #tpu.memory_space<vmem>>, vector<8x2xf32>
    %cst_9 = arith.constant dense<0.000000e+00> : vector<16x2xf32>
    %7 = tpu.matmul %0, %6, %cst_9 {dimension_numbers = #tpu.dot_dimension_numbers<[1], [0], [0], [1], [0, 0, 1, 1], [], []>} : vector<16x8xf32>, vector<8x2xf32>, vector<16x2xf32> -> vector<16x2xf32>
    %c0_10 = arith.constant 0 : index
    %c0_11 = arith.constant 0 : index
    %8 = vector.load %arg6[%c0_10, %c0_11] : memref<8x2xf32, #tpu.memory_space<vmem>>, vector<8x2xf32>
    %cst_12 = arith.constant dense<0.000000e+00> : vector<16x2xf32>
    %9 = tpu.matmul %1, %8, %cst_12 {dimension_numbers = #tpu.dot_dimension_numbers<[1], [0], [0], [1], [0, 0, 1, 1], [], []>} : vector<16x8xf32>, vector<8x2xf32>, vector<16x2xf32> -> vector<16x2xf32>
    %cst_13 = arith.constant 1.000000e+00 : f32
    %10 = vector.broadcast %cst_13 : f32 to vector<16x1xf32>
    %cst_14 = arith.constant 0.000000e+00 : f32
    %11 = vector.broadcast %cst_14 : f32 to vector<16x8xf32>
    %12 = vector.extract_strided_slice %5 {offsets = [0, 0], sizes = [16, 8], strides = [1, 1]} : vector<16x16xf32> to vector<16x8xf32>
    %13 = vector.extract_strided_slice %7 {offsets = [0, 0], sizes = [16, 1], strides = [1, 1]} : vector<16x2xf32> to vector<16x1xf32>
    %14 = vector.extract_strided_slice %9 {offsets = [0, 0], sizes = [16, 1], strides = [1, 1]} : vector<16x2xf32> to vector<16x1xf32>
    %cst_15 = arith.constant dense<0.000000e+00> : vector<16x16xf32>
    %15 = tpu.matmul %10, %14, %cst_15 {dimension_numbers = #tpu.dot_dimension_numbers<[1], [1], [0], [0], [0, 0, 1, 0], [], []>} : vector<16x1xf32>, vector<16x1xf32>, vector<16x16xf32> -> vector<16x16xf32>
    %16 = vector.broadcast %13 : vector<16x1xf32> to vector<16x16xf32>
    %17 = arith.addf %16, %15 : vector<16x16xf32>
    %cst_16 = arith.constant 0.000000e+00 : f32
    %18 = vector.broadcast %cst_16 : f32 to vector<16x16xf32>
    %19 = arith.cmpf ogt, %17, %18 : vector<16x16xf32>
    %cst_17 = arith.constant 2.000000e-01 : f32
    %20 = vector.broadcast %cst_17 : f32 to vector<16x16xf32>
    %21 = arith.mulf %20, %17 : vector<16x16xf32>
    %22 = arith.select %19, %17, %21 : vector<16x16xi1>, vector<16x16xf32>
    %cst_18 = arith.constant 0.000000e+00 : f32
    %23 = vector.broadcast %cst_18 : f32 to vector<16x16xf32>
    %24 = arith.cmpf ogt, %3, %23 : vector<16x16xf32>
    %cst_19 = arith.constant -9.000000e+15 : f32
    %25 = vector.broadcast %cst_19 : f32 to vector<16x16xf32>
    %26 = arith.select %24, %22, %25 : vector<16x16xi1>, vector<16x16xf32>
    %cst_20 = arith.constant dense<0xFF800000> : vector<16xf32>
    %27 = vector.multi_reduction <maximumf>, %26, %cst_20 [1] : vector<16x16xf32> to vector<16xf32>
    %28 = vector.shape_cast %27 : vector<16xf32> to vector<16x1xf32>
    %29 = vector.broadcast %28 : vector<16x1xf32> to vector<16x16xf32>
    %30 = arith.subf %26, %29 : vector<16x16xf32>
    %31 = math.exp %30 : vector<16x16xf32>
    %cst_21 = arith.constant dense<0.000000e+00> : vector<16xf32>
    %32 = vector.multi_reduction <add>, %31, %cst_21 [1] : vector<16x16xf32> to vector<16xf32>
    %33 = vector.shape_cast %32 : vector<16xf32> to vector<16x1xf32>
    %cst_22 = arith.constant dense<0.000000e+00> : vector<16x8xf32>
    %34 = tpu.matmul %31, %12, %cst_22 {dimension_numbers = #tpu.dot_dimension_numbers<[1], [0], [0], [1], [0, 0, 1, 1], [], []>} : vector<16x16xf32>, vector<16x8xf32>, vector<16x8xf32> -> vector<16x8xf32>
    %35 = tpu.reciprocal %33 : vector<16x1xf32> -> vector<16x1xf32>
    %36 = vector.broadcast %35 : vector<16x1xf32> to vector<16x8xf32>
    %37 = arith.mulf %34, %36 : vector<16x8xf32>
    %cst_23 = arith.constant 0.000000e+00 : f32
    %38 = vector.broadcast %cst_23 : f32 to vector<16x8xf32>
    %39 = arith.cmpf ogt, %37, %38 : vector<16x8xf32>
    %40 = math.exp %37 : vector<16x8xf32>
    %cst_24 = arith.constant 1.000000e+00 : f32
    %41 = vector.broadcast %cst_24 : f32 to vector<16x8xf32>
    %42 = arith.subf %40, %41 : vector<16x8xf32>
    %43 = arith.select %39, %37, %42 : vector<16x8xi1>, vector<16x8xf32>
    %cst_25 = arith.constant 5.000000e-01 : f32
    %44 = vector.broadcast %cst_25 : f32 to vector<16x8xf32>
    %45 = arith.mulf %43, %44 : vector<16x8xf32>
    %46 = arith.addf %11, %45 : vector<16x8xf32>
    %47 = vector.extract_strided_slice %5 {offsets = [0, 8], sizes = [16, 8], strides = [1, 1]} : vector<16x16xf32> to vector<16x8xf32>
    %48 = vector.extract_strided_slice %7 {offsets = [0, 1], sizes = [16, 1], strides = [1, 1]} : vector<16x2xf32> to vector<16x1xf32>
    %49 = vector.extract_strided_slice %9 {offsets = [0, 1], sizes = [16, 1], strides = [1, 1]} : vector<16x2xf32> to vector<16x1xf32>
    %cst_26 = arith.constant dense<0.000000e+00> : vector<16x16xf32>
    %50 = tpu.matmul %10, %49, %cst_26 {dimension_numbers = #tpu.dot_dimension_numbers<[1], [1], [0], [0], [0, 0, 1, 0], [], []>} : vector<16x1xf32>, vector<16x1xf32>, vector<16x16xf32> -> vector<16x16xf32>
    %51 = vector.broadcast %48 : vector<16x1xf32> to vector<16x16xf32>
    %52 = arith.addf %51, %50 : vector<16x16xf32>
    %cst_27 = arith.constant 0.000000e+00 : f32
    %53 = vector.broadcast %cst_27 : f32 to vector<16x16xf32>
    %54 = arith.cmpf ogt, %52, %53 : vector<16x16xf32>
    %cst_28 = arith.constant 2.000000e-01 : f32
    %55 = vector.broadcast %cst_28 : f32 to vector<16x16xf32>
    %56 = arith.mulf %55, %52 : vector<16x16xf32>
    %57 = arith.select %54, %52, %56 : vector<16x16xi1>, vector<16x16xf32>
    %cst_29 = arith.constant 0.000000e+00 : f32
    %58 = vector.broadcast %cst_29 : f32 to vector<16x16xf32>
    %59 = arith.cmpf ogt, %3, %58 : vector<16x16xf32>
    %cst_30 = arith.constant -9.000000e+15 : f32
    %60 = vector.broadcast %cst_30 : f32 to vector<16x16xf32>
    %61 = arith.select %59, %57, %60 : vector<16x16xi1>, vector<16x16xf32>
    %cst_31 = arith.constant dense<0xFF800000> : vector<16xf32>
    %62 = vector.multi_reduction <maximumf>, %61, %cst_31 [1] : vector<16x16xf32> to vector<16xf32>
    %63 = vector.shape_cast %62 : vector<16xf32> to vector<16x1xf32>
    %64 = vector.broadcast %63 : vector<16x1xf32> to vector<16x16xf32>
    %65 = arith.subf %61, %64 : vector<16x16xf32>
    %66 = math.exp %65 : vector<16x16xf32>
    %cst_32 = arith.constant dense<0.000000e+00> : vector<16xf32>
    %67 = vector.multi_reduction <add>, %66, %cst_32 [1] : vector<16x16xf32> to vector<16xf32>
    %68 = vector.shape_cast %67 : vector<16xf32> to vector<16x1xf32>
    %cst_33 = arith.constant dense<0.000000e+00> : vector<16x8xf32>
    %69 = tpu.matmul %66, %47, %cst_33 {dimension_numbers = #tpu.dot_dimension_numbers<[1], [0], [0], [1], [0, 0, 1, 1], [], []>} : vector<16x16xf32>, vector<16x8xf32>, vector<16x8xf32> -> vector<16x8xf32>
    %70 = tpu.reciprocal %68 : vector<16x1xf32> -> vector<16x1xf32>
    %71 = vector.broadcast %70 : vector<16x1xf32> to vector<16x8xf32>
    %72 = arith.mulf %69, %71 : vector<16x8xf32>
    %cst_34 = arith.constant 0.000000e+00 : f32
    %73 = vector.broadcast %cst_34 : f32 to vector<16x8xf32>
    %74 = arith.cmpf ogt, %72, %73 : vector<16x8xf32>
    %75 = math.exp %72 : vector<16x8xf32>
    %cst_35 = arith.constant 1.000000e+00 : f32
    %76 = vector.broadcast %cst_35 : f32 to vector<16x8xf32>
    %77 = arith.subf %75, %76 : vector<16x8xf32>
    %78 = arith.select %74, %72, %77 : vector<16x8xi1>, vector<16x8xf32>
    %cst_36 = arith.constant 5.000000e-01 : f32
    %79 = vector.broadcast %cst_36 : f32 to vector<16x8xf32>
    %80 = arith.mulf %78, %79 : vector<16x8xf32>
    %81 = arith.addf %46, %80 : vector<16x8xf32>
    %c0_37 = arith.constant 0 : index
    %c0_38 = arith.constant 0 : index
    %82 = vector.load %arg7[%c0_37, %c0_38] : memref<16x8xf32, #tpu.memory_space<vmem>>, vector<16x8xf32>
    tpu.vector_store %arg7[%c0_37, %c0_38], %81 {strides = array<i32>} : memref<16x8xf32, #tpu.memory_space<vmem>>, vector<16x8xf32>,
    return
  }
  func.func @transform_0(%arg0: i32) -> (i32, i32) {
    %c0_i32 = arith.constant 0 : i32
    %c0_i32_0 = arith.constant 0 : i32
    return %arg0, %c0_i32 : i32, i32
  }
  func.func @transform_1(%arg0: i32) -> (i32, i32) {
    %c0_i32 = arith.constant 0 : i32
    %c0_i32_0 = arith.constant 0 : i32
    %c0_i32_1 = arith.constant 0 : i32
    return %c0_i32, %c0_i32_0 : i32, i32
  }
  func.func @transform_2(%arg0: i32) -> (i32, i32) {
    %c0_i32 = arith.constant 0 : i32
    %c0_i32_0 = arith.constant 0 : i32
    return %arg0, %c0_i32 : i32, i32
  }
  func.func @transform_3(%arg0: i32) -> (i32, i32) {
    %c0_i32 = arith.constant 0 : i32
    %c0_i32_0 = arith.constant 0 : i32
    %c0_i32_1 = arith.constant 0 : i32
    return %c0_i32, %c0_i32_0 : i32, i32
  }
  func.func @transform_4(%arg0: i32) -> (i32, i32) {
    %c0_i32 = arith.constant 0 : i32
    %c0_i32_0 = arith.constant 0 : i32
    %c0_i32_1 = arith.constant 0 : i32
    return %c0_i32, %c0_i32_0 : i32, i32
  }
  func.func @transform_5(%arg0: i32) -> (i32, i32) {
    %c0_i32 = arith.constant 0 : i32
    %c0_i32_0 = arith.constant 0 : i32
    %c0_i32_1 = arith.constant 0 : i32
    return %c0_i32, %c0_i32_0 : i32, i32
  }
  func.func @transform_6(%arg0: i32) -> (i32, i32) {
    %c0_i32 = arith.constant 0 : i32
    %c0_i32_0 = arith.constant 0 : i32
    return %arg0, %c0_i32 : i32, i32
  }
}

</mosaic_0001>

<llo_original>
// kernel: tpu_custom_call.1
$region0: #{tpu_custom_call.1}
  #allocation0 [shape = 'u32[]', space=smem, size = 0x4, offset = 0x4, fixed_abs, tag = 'smem constant byte address 0x4 - core index']
  #allocation1 [shape = 'u32[144,128]{1,0:T(1,128)}', space=vmem, size = 0x12000, scoped, tag = 'internal scratch']
  %s0 = inlined_call_operand.vmem [shape: f32[16,8], index: 0, kind: input, shape index: {}]
  %s1 = inlined_call_operand.vmem [shape: f32[16,8], index: 1, kind: input, shape index: {}]
  %s2 = inlined_call_operand.vmem [shape: s8[16,16], index: 2, kind: input, shape index: {}]
  %s3 = inlined_call_operand.vmem [shape: f32[8,16], index: 3, kind: input, shape index: {}]
  %s4 = inlined_call_operand.vmem [shape: f32[8,2], index: 4, kind: input, shape index: {}]
  %s5 = inlined_call_operand.vmem [shape: f32[8,2], index: 5, kind: input, shape index: {}]
  %s6 = inlined_call_operand.vmem [shape: f32[16,8], index: 6, kind: output, shape index: {}]
  %s7 = sld [smem:[#allocation0]]
  $region34: #{tpu_custom_call.1} parent=0
    _
  %s9 = ssub.s32 1, %s7
  %s10 = scalar_select 0, %s9, %s7
  // Predicated region
  $region2: #{tpu_custom_call.1} parent=0 // pred_check
    _
  $region3: #{tpu_custom_call.1} parent=0 // pred_check_branch
    %12 = sbr.rel (0) target = $region5
  $region4: #{tpu_custom_call.1} parent=0 // pred_region
    _
  $region5: #{tpu_custom_call.1} parent=0 // pred_fallthru
    _
  // Predicated region
  $region6: #{tpu_custom_call.1} parent=0 // pred_check
    _
  $region7: #{tpu_custom_call.1} parent=0 // pred_check_branch
    %14 = sbr.rel (0) target = $region9
  $region8: #{tpu_custom_call.1} parent=0 // pred_region
    _
  $region9: #{tpu_custom_call.1} parent=0 // pred_fallthru
    _
  // Predicated region
  $region10: #{tpu_custom_call.1} parent=0 // pred_check
    _
  $region11: #{tpu_custom_call.1} parent=0 // pred_check_branch
    %16 = sbr.rel (0) target = $region13
  $region12: #{tpu_custom_call.1} parent=0 // pred_region
    _
  $region13: #{tpu_custom_call.1} parent=0 // pred_fallthru
    _
  // Predicated region
  $region14: #{tpu_custom_call.1} parent=0 // pred_check
    _
  $region15: #{tpu_custom_call.1} parent=0 // pred_check_branch
    %18 = sbr.rel (0) target = $region17
  $region16: #{tpu_custom_call.1} parent=0 // pred_region
    _
  $region17: #{tpu_custom_call.1} parent=0 // pred_fallthru
    _
  // Predicated region
  $region18: #{tpu_custom_call.1} parent=0 // pred_check
    _
  $region19: #{tpu_custom_call.1} parent=0 // pred_check_branch
    %20 = sbr.rel (0) target = $region21
  $region20: #{tpu_custom_call.1} parent=0 // pred_region
    _
  $region21: #{tpu_custom_call.1} parent=0 // pred_fallthru
    _
  // Predicated region
  $region22: #{tpu_custom_call.1} parent=0 // pred_check
    _
  $region23: #{tpu_custom_call.1} parent=0 // pred_check_branch
    %22 = sbr.rel (0) target = $region25
  $region24: #{tpu_custom_call.1} parent=0 // pred_region
    _
  $region25: #{tpu_custom_call.1} parent=0 // pred_fallthru
    _
  %v23 = vld [vmem:[%s0] sm:$0xff]
  %v24 = vld [vmem:[%s0 + $0x8] sm:$0xff]
  %v25 = vld [vmem:[%s1] sm:$0xff]
  %v26 = vld [vmem:[%s1 + $0x8] sm:$0xff]
  %v27 = vld [vmem:[%s2] sm:$0x3]
  %v28 = vld [vmem:[%s2 + $0x2] sm:$0x3]
  %v29 = vunpack.c.0.s8 %v27
  %v30 = vunpack.c.0.s8 %v28
  %v31 = vcvt.s32.f32 %v29
  %v32 = vcvt.s32.f32 %v30
  %v33 = vld [vmem:[%s3] sm:$0xff]
  %vm34 = vcmask 64512
  %v36 = vsel %vm34, %v25, 0
  %v39 = vsel %vm34, %v26, 0
  %41 = vmatprep.subr.mxu0 0.0
  %42 = vmatpush1.msra.mxu0 0.0
  %43 = vmatprep.subr.mxu0 0.0
  %44 = vmatpush1.msra.mxu0 0.0
  %45 = vmatprep.subr.mxu0 0.0
  %46 = vmatpush1.msra.mxu0 0.0
  %47 = vmatprep.subr.mxu0 0.0
  %48 = vmatpush1.msra.mxu0 0.0
  %49 = vmatprep.subr.mxu0 0.0
  %50 = vmatpush1.msra.mxu0 0.0
  %51 = vmatprep.subr.mxu0 0.0
  %52 = vmatpush1.msra.mxu0 0.0
  %53 = vmatprep.subr.mxu0 0.0
  %54 = vmatpush1.msra.mxu0 0.0
  %55 = vmatprep.subr.mxu0 0.0
  %56 = vmatpush1.msra.mxu0 0.0
  %57 = vmatprep.subr.mxu0 0.0
  %58 = vmatpush1.msra.mxu0 0.0
  %59 = vmatprep.subr.mxu0 0.0
  %60 = vmatpush1.msra.mxu0 0.0
  %61 = vmatprep.subr.mxu0 0.0
  %62 = vmatpush1.msra.mxu0 0.0
  %63 = vmatprep.subr.mxu0 0.0
  %64 = vmatpush1.msra.mxu0 0.0
  %65 = vmatprep.subr.mxu0 0.0
  %66 = vmatpush1.msra.mxu0 0.0
  %67 = vmatprep.subr.mxu0 0.0
  %68 = vmatpush1.msra.mxu0 0.0
  %69 = vmatprep.subr.mxu0 0.0
  %70 = vmatpush1.msra.mxu0 0.0
  %71 = vmatprep.subr.mxu0 0.0
  %72 = vmatpush1.msra.mxu0 %v33
  %73 = vmatprep.subr.mxu0 0.0
  %74 = vmatpush2.msra.mxu0 0.0
  %75 = vmatprep.subr.mxu0 0.0
  %76 = vmatpush2.msra.mxu0 0.0
  %77 = vmatprep.subr.mxu0 0.0
  %78 = vmatpush2.msra.mxu0 0.0
  %79 = vmatprep.subr.mxu0 0.0
  %80 = vmatpush2.msra.mxu0 0.0
  %81 = vmatprep.subr.mxu0 0.0
  %82 = vmatpush2.msra.mxu0 0.0
  %83 = vmatprep.subr.mxu0 0.0
  %84 = vmatpush2.msra.mxu0 0.0
  %85 = vmatprep.subr.mxu0 0.0
  %86 = vmatpush2.msra.mxu0 0.0
  %87 = vmatprep.subr.mxu0 0.0
  %88 = vmatpush2.msra.mxu0 0.0
  %89 = vmatprep.subr.mxu0 0.0
  %90 = vmatpush2.msra.mxu0 0.0
  %91 = vmatprep.subr.mxu0 0.0
  %92 = vmatpush2.msra.mxu0 0.0
  %93 = vmatprep.subr.mxu0 0.0
  %94 = vmatpush2.msra.mxu0 0.0
  %95 = vmatprep.subr.mxu0 0.0
  %96 = vmatpush2.msra.mxu0 0.0
  %97 = vmatprep.subr.mxu0 0.0
  %98 = vmatpush2.msra.mxu0 0.0
  %99 = vmatprep.subr.mxu0 0.0
  %100 = vmatpush2.msra.mxu0 0.0
  %101 = vmatprep.subr.mxu0 0.0
  %102 = vmatpush2.msra.mxu0 0.0
  %103 = vmatprep.subr.mxu0 0.0
  %104 = vmatpush2.msra.mxu0 0.0
  %105 = vmatprep.mubr.f32.mxu0 0.0
  %106 = vmatmul.mubr.f32.gmra.mxu0 %v36
  %v107 = vpop.f32.mrf.mxu0
  %v108 = vadd.f32 0.0, %v107
  %v109 = vpop.f32.mrf.mxu0
  %110 = vmatprep.mubr.f32.mxu0 0.0
  %111 = vmatmul.mubr.f32.gmra.mxu0 %v39
  %v112 = vpop.f32.mrf.mxu0
  %v113 = vadd.f32 0.0, %v112
  %v114 = vpop.f32.mrf.mxu0
  %115 = vdwg.mxu0
  %v116 = vld [vmem:[%s4] sm:$0xff]
  %v118 = vsel %vm34, %v23, 0
  %v121 = vsel %vm34, %v24, 0
  %123 = vmatprep.subr.mxu0 0.0
  %124 = vmatpush1.msra.mxu0 0.0
  %125 = vmatprep.subr.mxu0 0.0
  %126 = vmatpush1.msra.mxu0 0.0
  %127 = vmatprep.subr.mxu0 0.0
  %128 = vmatpush1.msra.mxu0 0.0
  %129 = vmatprep.subr.mxu0 0.0
  %130 = vmatpush1.msra.mxu0 0.0
  %131 = vmatprep.subr.mxu0 0.0
  %132 = vmatpush1.msra.mxu0 0.0
  %133 = vmatprep.subr.mxu0 0.0
  %134 = vmatpush1.msra.mxu0 0.0
  %135 = vmatprep.subr.mxu0 0.0
  %136 = vmatpush1.msra.mxu0 0.0
  %137 = vmatprep.subr.mxu0 0.0
  %138 = vmatpush1.msra.mxu0 0.0
  %139 = vmatprep.subr.mxu0 0.0
  %140 = vmatpush1.msra.mxu0 0.0
  %141 = vmatprep.subr.mxu0 0.0
  %142 = vmatpush1.msra.mxu0 0.0
  %143 = vmatprep.subr.mxu0 0.0
  %144 = vmatpush1.msra.mxu0 0.0
  %145 = vmatprep.subr.mxu0 0.0
  %146 = vmatpush1.msra.mxu0 0.0
  %147 = vmatprep.subr.mxu0 0.0
  %148 = vmatpush1.msra.mxu0 0.0
  %149 = vmatprep.subr.mxu0 0.0
  %150 = vmatpush1.msra.mxu0 0.0
  %151 = vmatprep.subr.mxu0 0.0
  %152 = vmatpush1.msra.mxu0 0.0
  %153 = vmatprep.subr.mxu0 0.0
  %154 = vmatpush1.msra.mxu0 %v116
  %155 = vmatprep.subr.mxu0 0.0
  %156 = vmatpush2.msra.mxu0 0.0
  %157 = vmatprep.subr.mxu0 0.0
  %158 = vmatpush2.msra.mxu0 0.0
  %159 = vmatprep.subr.mxu0 0.0
  %160 = vmatpush2.msra.mxu0 0.0
  %161 = vmatprep.subr.mxu0 0.0
  %162 = vmatpush2.msra.mxu0 0.0
  %163 = vmatprep.subr.mxu0 0.0
  %164 = vmatpush2.msra.mxu0 0.0
  %165 = vmatprep.subr.mxu0 0.0
  %166 = vmatpush2.msra.mxu0 0.0
  %167 = vmatprep.subr.mxu0 0.0
  %168 = vmatpush2.msra.mxu0 0.0
  %169 = vmatprep.subr.mxu0 0.0
  %170 = vmatpush2.msra.mxu0 0.0
  %171 = vmatprep.subr.mxu0 0.0
  %172 = vmatpush2.msra.mxu0 0.0
  %173 = vmatprep.subr.mxu0 0.0
  %174 = vmatpush2.msra.mxu0 0.0
  %175 = vmatprep.subr.mxu0 0.0
  %176 = vmatpush2.msra.mxu0 0.0
  %177 = vmatprep.subr.mxu0 0.0
  %178 = vmatpush2.msra.mxu0 0.0
  %179 = vmatprep.subr.mxu0 0.0
  %180 = vmatpush2.msra.mxu0 0.0
  %181 = vmatprep.subr.mxu0 0.0
  %182 = vmatpush2.msra.mxu0 0.0
  %183 = vmatprep.subr.mxu0 0.0
  %184 = vmatpush2.msra.mxu0 0.0
  %185 = vmatprep.subr.mxu0 0.0
  %186 = vmatpush2.msra.mxu0 0.0
  %187 = vmatprep.mubr.f32.mxu0 0.0
  %188 = vmatmul.mubr.f32.gmra.mxu0 %v118
  %v189 = vpop.f32.mrf.mxu0
  %v190 = vadd.f32 0.0, %v189
  %v191 = vpop.f32.mrf.mxu0
  %192 = vmatprep.mubr.f32.mxu0 0.0
  %193 = vmatmul.mubr.f32.gmra.mxu0 %v121
  %v194 = vpop.f32.mrf.mxu0
  %v195 = vadd.f32 0.0, %v194
  %v196 = vpop.f32.mrf.mxu0
  %197 = vdwg.mxu0
  %v198 = vld [vmem:[%s5] sm:$0xff]
  %199 = vmatprep.subr.mxu0 0.0
  %200 = vmatpush1.msra.mxu0 0.0
  %201 = vmatprep.subr.mxu0 0.0
  %202 = vmatpush1.msra.mxu0 0.0
  %203 = vmatprep.subr.mxu0 0.0
  %204 = vmatpush1.msra.mxu0 0.0
  %205 = vmatprep.subr.mxu0 0.0
  %206 = vmatpush1.msra.mxu0 0.0
  %207 = vmatprep.subr.mxu0 0.0
  %208 = vmatpush1.msra.mxu0 0.0
  %209 = vmatprep.subr.mxu0 0.0
  %210 = vmatpush1.msra.mxu0 0.0
  %211 = vmatprep.subr.mxu0 0.0
  %212 = vmatpush1.msra.mxu0 0.0
  %213 = vmatprep.subr.mxu0 0.0
  %214 = vmatpush1.msra.mxu0 0.0
  %215 = vmatprep.subr.mxu0 0.0
  %216 = vmatpush1.msra.mxu0 0.0
  %217 = vmatprep.subr.mxu0 0.0
  %218 = vmatpush1.msra.mxu0 0.0
  %219 = vmatprep.subr.mxu0 0.0
  %220 = vmatpush1.msra.mxu0 0.0
  %221 = vmatprep.subr.mxu0 0.0
  %222 = vmatpush1.msra.mxu0 0.0
  %223 = vmatprep.subr.mxu0 0.0
  %224 = vmatpush1.msra.mxu0 0.0
  %225 = vmatprep.subr.mxu0 0.0
  %226 = vmatpush1.msra.mxu0 0.0
  %227 = vmatprep.subr.mxu0 0.0
  %228 = vmatpush1.msra.mxu0 0.0
  %229 = vmatprep.subr.mxu0 0.0
  %230 = vmatpush1.msra.mxu0 %v198
  %231 = vmatprep.subr.mxu0 0.0
  %232 = vmatpush2.msra.mxu0 0.0
  %233 = vmatprep.subr.mxu0 0.0
  %234 = vmatpush2.msra.mxu0 0.0
  %235 = vmatprep.subr.mxu0 0.0
  %236 = vmatpush2.msra.mxu0 0.0
  %237 = vmatprep.subr.mxu0 0.0
  %238 = vmatpush2.msra.mxu0 0.0
  %239 = vmatprep.subr.mxu0 0.0
  %240 = vmatpush2.msra.mxu0 0.0
  %241 = vmatprep.subr.mxu0 0.0
  %242 = vmatpush2.msra.mxu0 0.0
  %243 = vmatprep.subr.mxu0 0.0
  %244 = vmatpush2.msra.mxu0 0.0
  %245 = vmatprep.subr.mxu0 0.0
  %246 = vmatpush2.msra.mxu0 0.0
  %247 = vmatprep.subr.mxu0 0.0
  %248 = vmatpush2.msra.mxu0 0.0
  %249 = vmatprep.subr.mxu0 0.0
  %250 = vmatpush2.msra.mxu0 0.0
  %251 = vmatprep.subr.mxu0 0.0
  %252 = vmatpush2.msra.mxu0 0.0
  %253 = vmatprep.subr.mxu0 0.0
  %254 = vmatpush2.msra.mxu0 0.0
  %255 = vmatprep.subr.mxu0 0.0
  %256 = vmatpush2.msra.mxu0 0.0
  %257 = vmatprep.subr.mxu0 0.0
  %258 = vmatpush2.msra.mxu0 0.0
  %259 = vmatprep.subr.mxu0 0.0
  %260 = vmatpush2.msra.mxu0 0.0
  %261 = vmatprep.subr.mxu0 0.0
  %262 = vmatpush2.msra.mxu0 0.0
  %263 = vmatprep.mubr.f32.mxu0 0.0
  %264 = vmatmul.mubr.f32.gmra.mxu0 %v36
  %v265 = vpop.f32.mrf.mxu0
  %v266 = vadd.f32 0.0, %v265
  %v267 = vpop.f32.mrf.mxu0
  %268 = vmatprep.mubr.f32.mxu0 0.0
  %269 = vmatmul.mubr.f32.gmra.mxu0 %v39
  %v270 = vpop.f32.mrf.mxu0
  %v271 = vadd.f32 0.0, %v270
  %v272 = vpop.f32.mrf.mxu0
  %273 = vdwg.mxu0
  %vm274 = vcmask 7168
  %v276 = vsel %vm274, 1.0, 0
  %v279 = vsel %vm274, %v266, 0
  %v282 = vsel %vm274, %v271, 0
  %284 = vmatprep.subr.mxu0 0.0
  %285 = vmatpush1.xpose.msra.mxu0 0.0
  %286 = vmatprep.subr.mxu0 0.0
  %287 = vmatpush1.xpose.msra.mxu0 0.0
  %288 = vmatprep.subr.mxu0 0.0
  %289 = vmatpush1.xpose.msra.mxu0 0.0
  %290 = vmatprep.subr.mxu0 0.0
  %291 = vmatpush1.xpose.msra.mxu0 0.0
  %292 = vmatprep.subr.mxu0 0.0
  %293 = vmatpush1.xpose.msra.mxu0 0.0
  %294 = vmatprep.subr.mxu0 0.0
  %295 = vmatpush1.xpose.msra.mxu0 0.0
  %296 = vmatprep.subr.mxu0 0.0
  %297 = vmatpush1.xpose.msra.mxu0 0.0
  %298 = vmatprep.subr.mxu0 0.0
  %299 = vmatpush1.xpose.msra.mxu0 0.0
  %300 = vmatprep.subr.mxu0 0.0
  %301 = vmatpush1.xpose.msra.mxu0 0.0
  %302 = vmatprep.subr.mxu0 0.0
  %303 = vmatpush1.xpose.msra.mxu0 0.0
  %304 = vmatprep.subr.mxu0 0.0
  %305 = vmatpush1.xpose.msra.mxu0 0.0
  %306 = vmatprep.subr.mxu0 0.0
  %307 = vmatpush1.xpose.msra.mxu0 0.0
  %308 = vmatprep.subr.mxu0 0.0
  %309 = vmatpush1.xpose.msra.mxu0 0.0
  %310 = vmatprep.subr.mxu0 0.0
  %311 = vmatpush1.xpose.msra.mxu0 0.0
  %312 = vmatprep.subr.mxu0 0.0
  %313 = vmatpush1.xpose.msra.mxu0 %v282
  %314 = vmatprep.subr.mxu0 0.0
  %315 = vmatpush1.xpose.msra.mxu0 %v279
  %316 = vmatprep.subr.mxu0 0.0
  %317 = vmatpush2.xpose.msra.mxu0 0.0
  %318 = vmatprep.subr.mxu0 0.0
  %319 = vmatpush2.xpose.msra.mxu0 0.0
  %320 = vmatprep.subr.mxu0 0.0
  %321 = vmatpush2.xpose.msra.mxu0 0.0
  %322 = vmatprep.subr.mxu0 0.0
  %323 = vmatpush2.xpose.msra.mxu0 0.0
  %324 = vmatprep.subr.mxu0 0.0
  %325 = vmatpush2.xpose.msra.mxu0 0.0
  %326 = vmatprep.subr.mxu0 0.0
  %327 = vmatpush2.xpose.msra.mxu0 0.0
  %328 = vmatprep.subr.mxu0 0.0
  %329 = vmatpush2.xpose.msra.mxu0 0.0
  %330 = vmatprep.subr.mxu0 0.0
  %331 = vmatpush2.xpose.msra.mxu0 0.0
  %332 = vmatprep.subr.mxu0 0.0
  %333 = vmatpush2.xpose.msra.mxu0 0.0
  %334 = vmatprep.subr.mxu0 0.0
  %335 = vmatpush2.xpose.msra.mxu0 0.0
  %336 = vmatprep.subr.mxu0 0.0
  %337 = vmatpush2.xpose.msra.mxu0 0.0
  %338 = vmatprep.subr.mxu0 0.0
  %339 = vmatpush2.xpose.msra.mxu0 0.0
  %340 = vmatprep.subr.mxu0 0.0
  %341 = vmatpush2.xpose.msra.mxu0 0.0
  %342 = vmatprep.subr.mxu0 0.0
  %343 = vmatpush2.xpose.msra.mxu0 0.0
  %344 = vmatprep.subr.mxu0 0.0
  %345 = vmatpush2.xpose.msra.mxu0 0.0
  %346 = vmatprep.subr.mxu0 0.0
  %347 = vmatpush2.xpose.msra.mxu0 0.0
  %348 = vmatprep.mubr.f32.mxu0 0.0
  %349 = vmatmul.mubr.f32.gmra.mxu0 %v276
  %v350 = vpop.f32.mrf.mxu0
  %v351 = vadd.f32 0.0, %v350
  %v352 = vpop.f32.mrf.mxu0
  %353 = vmatprep.mubr.f32.mxu0 0.0
  %354 = vmatmul.mubr.f32.gmra.mxu0 %v276
  %v355 = vpop.f32.mrf.mxu0
  %v356 = vadd.f32 0.0, %v355
  %v357 = vpop.f32.mrf.mxu0
  %358 = vdwg.mxu0
  %360 = vset.pattern.permute.xlu0 0
  %361 = vperm.xlu0 %360, %v190
  %v362 = vpop.permute.xlu0 %361
  %365 = vset.pattern.permute.xlu0 0
  %366 = vperm.xlu0 %365, %v195
  %v367 = vpop.permute.xlu0 %366
  %v369 = vadd.f32 %v362, %v351
  %v370 = vadd.f32 %v367, %v356
  %vm371 = vcmp.gt.f32.partialorder %v369, 0.0
  %vm372 = vcmp.gt.f32.partialorder %v370, 0.0
  %v373 = vmul.f32 %v369, 0.2
  %v374 = vmul.f32 %v370, 0.2
  %v375 = vsel %vm371, %v369, %v373
  %v376 = vsel %vm372, %v370, %v374
  %vm377 = vcmp.gt.f32.partialorder %v31, 0.0
  %vm378 = vcmp.gt.f32.partialorder %v32, 0.0
  %v379 = vsel %vm377, %v375, -9e+15
  %v380 = vsel %vm378, %v376, -9e+15
  %vm381 = vcmask 130048
  %v382 = vsel %vm381, %v379, -inf
  %383 = vmax.xlane.f32.xlu0 %v382
  %v384 = vpop.xlane.xlu0 %383
  %v385 = vsel %vm381, %v380, -inf
  %386 = vmax.xlane.f32.xlu0 %v385
  %v387 = vpop.xlane.xlu0 %386
  %v388 = vsub.f32 %v379, %v384
  %v389 = vsub.f32 %v380, %v387
  %v390 = vmul.f32 %v388, 1.442695
  %v391 = vpow.pop %v390
  %v392 = vmul.f32 %v389, 1.442695
  %v393 = vpow.pop %v392
  %v394 = vsel %vm381, %v391, 0.0
  %395 = vadd.xlane.f32.xlu0 %v394
  %v396 = vpop.xlane.xlu0 %395
  %v397 = vsel %vm381, %v393, 0.0
  %398 = vadd.xlane.f32.xlu0 %v397
  %v399 = vpop.xlane.xlu0 %398
  %v401 = vsel %vm381, %v391, 0
  %v404 = vsel %vm381, %v393, 0
  %406 = vmatprep.subr.mxu0 0.0
  %407 = vmatpush1.msra.mxu0 0.0
  %408 = vmatprep.subr.mxu0 0.0
  %409 = vmatpush1.msra.mxu0 0.0
  %410 = vmatprep.subr.mxu0 0.0
  %411 = vmatpush1.msra.mxu0 0.0
  %412 = vmatprep.subr.mxu0 0.0
  %413 = vmatpush1.msra.mxu0 0.0
  %414 = vmatprep.subr.mxu0 0.0
  %415 = vmatpush1.msra.mxu0 0.0
  %416 = vmatprep.subr.mxu0 0.0
  %417 = vmatpush1.msra.mxu0 0.0
  %418 = vmatprep.subr.mxu0 0.0
  %419 = vmatpush1.msra.mxu0 0.0
  %420 = vmatprep.subr.mxu0 0.0
  %421 = vmatpush1.msra.mxu0 0.0
  %422 = vmatprep.subr.mxu0 0.0
  %423 = vmatpush1.msra.mxu0 0.0
  %424 = vmatprep.subr.mxu0 0.0
  %425 = vmatpush1.msra.mxu0 0.0
  %426 = vmatprep.subr.mxu0 0.0
  %427 = vmatpush1.msra.mxu0 0.0
  %428 = vmatprep.subr.mxu0 0.0
  %429 = vmatpush1.msra.mxu0 0.0
  %430 = vmatprep.subr.mxu0 0.0
  %431 = vmatpush1.msra.mxu0 0.0
  %432 = vmatprep.subr.mxu0 0.0
  %433 = vmatpush1.msra.mxu0 0.0
  %434 = vmatprep.subr.mxu0 0.0
  %435 = vmatpush1.msra.mxu0 %v113
  %436 = vmatprep.subr.mxu0 0.0
  %437 = vmatpush1.msra.mxu0 %v108
  %438 = vmatprep.subr.mxu0 0.0
  %439 = vmatpush2.msra.mxu0 0.0
  %440 = vmatprep.subr.mxu0 0.0
  %441 = vmatpush2.msra.mxu0 0.0
  %442 = vmatprep.subr.mxu0 0.0
  %443 = vmatpush2.msra.mxu0 0.0
  %444 = vmatprep.subr.mxu0 0.0
  %445 = vmatpush2.msra.mxu0 0.0
  %446 = vmatprep.subr.mxu0 0.0
  %447 = vmatpush2.msra.mxu0 0.0
  %448 = vmatprep.subr.mxu0 0.0
  %449 = vmatpush2.msra.mxu0 0.0
  %450 = vmatprep.subr.mxu0 0.0
  %451 = vmatpush2.msra.mxu0 0.0
  %452 = vmatprep.subr.mxu0 0.0
  %453 = vmatpush2.msra.mxu0 0.0
  %454 = vmatprep.subr.mxu0 0.0
  %455 = vmatpush2.msra.mxu0 0.0
  %456 = vmatprep.subr.mxu0 0.0
  %457 = vmatpush2.msra.mxu0 0.0
  %458 = vmatprep.subr.mxu0 0.0
  %459 = vmatpush2.msra.mxu0 0.0
  %460 = vmatprep.subr.mxu0 0.0
  %461 = vmatpush2.msra.mxu0 0.0
  %462 = vmatprep.subr.mxu0 0.0
  %463 = vmatpush2.msra.mxu0 0.0
  %464 = vmatprep.subr.mxu0 0.0
  %465 = vmatpush2.msra.mxu0 0.0
  %466 = vmatprep.subr.mxu0 0.0
  %467 = vmatpush2.msra.mxu0 0.0
  %468 = vmatprep.subr.mxu0 0.0
  %469 = vmatpush2.msra.mxu0 0.0
  %470 = vmatprep.mubr.f32.mxu0 0.0
  %471 = vmatmul.mubr.f32.gmra.mxu0 %v401
  %v472 = vpop.f32.mrf.mxu0
  %v473 = vadd.f32 0.0, %v472
  %v474 = vpop.f32.mrf.mxu0
  %475 = vmatprep.mubr.f32.mxu0 0.0
  %476 = vmatmul.mubr.f32.gmra.mxu0 %v404
  %v477 = vpop.f32.mrf.mxu0
  %v478 = vadd.f32 0.0, %v477
  %v479 = vpop.f32.mrf.mxu0
  %480 = vdwg.mxu0
  %v481 = vrcp.pop %v396
  %v482 = vrcp.pop %v399
  %v483 = vmul.f32 %v473, %v481
  %v484 = vmul.f32 %v478, %v482
  %vm485 = vcmp.gt.f32.partialorder %v483, 0.0
  %vm486 = vcmp.gt.f32.partialorder %v484, 0.0
  %v487 = vmul.f32 %v483, 1.442695
  %v488 = vpow.pop %v487
  %v489 = vmul.f32 %v484, 1.442695
  %v490 = vpow.pop %v489
  %v491 = vsub.f32 %v488, 1.0
  %v492 = vsub.f32 %v490, 1.0
  %v493 = vsel %vm485, %v483, %v491
  %v494 = vsel %vm486, %v484, %v492
  %v495 = vmul.f32 %v493, 0.5
  %v496 = vmul.f32 %v494, 0.5
  %v497 = vadd.f32 %v495, 0.0
  %v498 = vadd.f32 %v496, 0.0
  %499 = vrot.lane.b32.xlu0 %v266, 127
  %v500 = vpop.permute.xlu0 %499
  %501 = vrot.lane.b32.xlu0 %v271, 127
  %v502 = vpop.permute.xlu0 %501
  %v503 = vsel %vm274, %v500, 0
  %v505 = vsel %vm274, %v502, 0
  %507 = vmatprep.subr.mxu0 0.0
  %508 = vmatpush1.xpose.msra.mxu0 0.0
  %509 = vmatprep.subr.mxu0 0.0
  %510 = vmatpush1.xpose.msra.mxu0 0.0
  %511 = vmatprep.subr.mxu0 0.0
  %512 = vmatpush1.xpose.msra.mxu0 0.0
  %513 = vmatprep.subr.mxu0 0.0
  %514 = vmatpush1.xpose.msra.mxu0 0.0
  %515 = vmatprep.subr.mxu0 0.0
  %516 = vmatpush1.xpose.msra.mxu0 0.0
  %517 = vmatprep.subr.mxu0 0.0
  %518 = vmatpush1.xpose.msra.mxu0 0.0
  %519 = vmatprep.subr.mxu0 0.0
  %520 = vmatpush1.xpose.msra.mxu0 0.0
  %521 = vmatprep.subr.mxu0 0.0
  %522 = vmatpush1.xpose.msra.mxu0 0.0
  %523 = vmatprep.subr.mxu0 0.0
  %524 = vmatpush1.xpose.msra.mxu0 0.0
  %525 = vmatprep.subr.mxu0 0.0
  %526 = vmatpush1.xpose.msra.mxu0 0.0
  %527 = vmatprep.subr.mxu0 0.0
  %528 = vmatpush1.xpose.msra.mxu0 0.0
  %529 = vmatprep.subr.mxu0 0.0
  %530 = vmatpush1.xpose.msra.mxu0 0.0
  %531 = vmatprep.subr.mxu0 0.0
  %532 = vmatpush1.xpose.msra.mxu0 0.0
  %533 = vmatprep.subr.mxu0 0.0
  %534 = vmatpush1.xpose.msra.mxu0 0.0
  %535 = vmatprep.subr.mxu0 0.0
  %536 = vmatpush1.xpose.msra.mxu0 %v505
  %537 = vmatprep.subr.mxu0 0.0
  %538 = vmatpush1.xpose.msra.mxu0 %v503
  %539 = vmatprep.subr.mxu0 0.0
  %540 = vmatpush2.xpose.msra.mxu0 0.0
  %541 = vmatprep.subr.mxu0 0.0
  %542 = vmatpush2.xpose.msra.mxu0 0.0
  %543 = vmatprep.subr.mxu0 0.0
  %544 = vmatpush2.xpose.msra.mxu0 0.0
  %545 = vmatprep.subr.mxu0 0.0
  %546 = vmatpush2.xpose.msra.mxu0 0.0
  %547 = vmatprep.subr.mxu0 0.0
  %548 = vmatpush2.xpose.msra.mxu0 0.0
  %549 = vmatprep.subr.mxu0 0.0
  %550 = vmatpush2.xpose.msra.mxu0 0.0
  %551 = vmatprep.subr.mxu0 0.0
  %552 = vmatpush2.xpose.msra.mxu0 0.0
  %553 = vmatprep.subr.mxu0 0.0
  %554 = vmatpush2.xpose.msra.mxu0 0.0
  %555 = vmatprep.subr.mxu0 0.0
  %556 = vmatpush2.xpose.msra.mxu0 0.0
  %557 = vmatprep.subr.mxu0 0.0
  %558 = vmatpush2.xpose.msra.mxu0 0.0
  %559 = vmatprep.subr.mxu0 0.0
  %560 = vmatpush2.xpose.msra.mxu0 0.0
  %561 = vmatprep.subr.mxu0 0.0
  %562 = vmatpush2.xpose.msra.mxu0 0.0
  %563 = vmatprep.subr.mxu0 0.0
  %564 = vmatpush2.xpose.msra.mxu0 0.0
  %565 = vmatprep.subr.mxu0 0.0
  %566 = vmatpush2.xpose.msra.mxu0 0.0
  %567 = vmatprep.subr.mxu0 0.0
  %568 = vmatpush2.xpose.msra.mxu0 0.0
  %569 = vmatprep.subr.mxu0 0.0
  %570 = vmatpush2.xpose.msra.mxu0 0.0
  %571 = vmatprep.mubr.f32.mxu0 0.0
  %572 = vmatmul.mubr.f32.gmra.mxu0 %v276
  %v573 = vpop.f32.mrf.mxu0
  %v574 = vadd.f32 0.0, %v573
  %v575 = vpop.f32.mrf.mxu0
  %576 = vmatprep.mubr.f32.mxu0 0.0
  %577 = vmatmul.mubr.f32.gmra.mxu0 %v276
  %v578 = vpop.f32.mrf.mxu0
  %v579 = vadd.f32 0.0, %v578
  %v580 = vpop.f32.mrf.mxu0
  %581 = vdwg.mxu0
  %582 = vset.pattern.permute.xlu0 1
  %583 = vperm.xlu0 %582, %v190
  %v584 = vpop.permute.xlu0 %583
  %586 = vset.pattern.permute.xlu0 1
  %587 = vperm.xlu0 %586, %v195
  %v588 = vpop.permute.xlu0 %587
  %v590 = vadd.f32 %v584, %v574
  %v591 = vadd.f32 %v588, %v579
  %vm592 = vcmp.gt.f32.partialorder %v590, 0.0
  %vm593 = vcmp.gt.f32.partialorder %v591, 0.0
  %v594 = vmul.f32 %v590, 0.2
  %v595 = vmul.f32 %v591, 0.2
  %v596 = vsel %vm592, %v590, %v594
  %v597 = vsel %vm593, %v591, %v595
  %v598 = vsel %vm377, %v596, -9e+15
  %v599 = vsel %vm378, %v597, -9e+15
  %v600 = vsel %vm381, %v598, -inf
  %601 = vmax.xlane.f32.xlu0 %v600
  %v602 = vpop.xlane.xlu0 %601
  %v603 = vsel %vm381, %v599, -inf
  %604 = vmax.xlane.f32.xlu0 %v603
  %v605 = vpop.xlane.xlu0 %604
  %v606 = vsub.f32 %v598, %v602
  %v607 = vsub.f32 %v599, %v605
  %v608 = vmul.f32 %v606, 1.442695
  %v609 = vpow.pop %v608
  %v610 = vmul.f32 %v607, 1.442695
  %v611 = vpow.pop %v610
  %v612 = vsel %vm381, %v609, 0.0
  %613 = vadd.xlane.f32.xlu0 %v612
  %v614 = vpop.xlane.xlu0 %613
  %v615 = vsel %vm381, %v611, 0.0
  %616 = vadd.xlane.f32.xlu0 %v615
  %v617 = vpop.xlane.xlu0 %616
  %620 = vrot.lane.b32.xlu0 %v108, 120
  %v621 = vpop.permute.xlu0 %620
  %622 = vrot.lane.b32.xlu0 %v113, 120
  %v623 = vpop.permute.xlu0 %622
  %v627 = vsel %vm381, %v609, 0
  %v630 = vsel %vm381, %v611, 0
  %632 = vmatprep.subr.mxu0 0.0
  %633 = vmatpush1.msra.mxu0 0.0
  %634 = vmatprep.subr.mxu0 0.0
  %635 = vmatpush1.msra.mxu0 0.0
  %636 = vmatprep.subr.mxu0 0.0
  %637 = vmatpush1.msra.mxu0 0.0
  %638 = vmatprep.subr.mxu0 0.0
  %639 = vmatpush1.msra.mxu0 0.0
  %640 = vmatprep.subr.mxu0 0.0
  %641 = vmatpush1.msra.mxu0 0.0
  %642 = vmatprep.subr.mxu0 0.0
  %643 = vmatpush1.msra.mxu0 0.0
  %644 = vmatprep.subr.mxu0 0.0
  %645 = vmatpush1.msra.mxu0 0.0
  %646 = vmatprep.subr.mxu0 0.0
  %647 = vmatpush1.msra.mxu0 0.0
  %648 = vmatprep.subr.mxu0 0.0
  %649 = vmatpush1.msra.mxu0 0.0
  %650 = vmatprep.subr.mxu0 0.0
  %651 = vmatpush1.msra.mxu0 0.0
  %652 = vmatprep.subr.mxu0 0.0
  %653 = vmatpush1.msra.mxu0 0.0
  %654 = vmatprep.subr.mxu0 0.0
  %655 = vmatpush1.msra.mxu0 0.0
  %656 = vmatprep.subr.mxu0 0.0
  %657 = vmatpush1.msra.mxu0 0.0
  %658 = vmatprep.subr.mxu0 0.0
  %659 = vmatpush1.msra.mxu0 0.0
  %660 = vmatprep.subr.mxu0 0.0
  %661 = vmatpush1.msra.mxu0 %v623
  %662 = vmatprep.subr.mxu0 0.0
  %663 = vmatpush1.msra.mxu0 %v621
  %664 = vmatprep.subr.mxu0 0.0
  %665 = vmatpush2.msra.mxu0 0.0
  %666 = vmatprep.subr.mxu0 0.0
  %667 = vmatpush2.msra.mxu0 0.0
  %668 = vmatprep.subr.mxu0 0.0
  %669 = vmatpush2.msra.mxu0 0.0
  %670 = vmatprep.subr.mxu0 0.0
  %671 = vmatpush2.msra.mxu0 0.0
  %672 = vmatprep.subr.mxu0 0.0
  %673 = vmatpush2.msra.mxu0 0.0
  %674 = vmatprep.subr.mxu0 0.0
  %675 = vmatpush2.msra.mxu0 0.0
  %676 = vmatprep.subr.mxu0 0.0
  %677 = vmatpush2.msra.mxu0 0.0
  %678 = vmatprep.subr.mxu0 0.0
  %679 = vmatpush2.msra.mxu0 0.0
  %680 = vmatprep.subr.mxu0 0.0
  %681 = vmatpush2.msra.mxu0 0.0
  %682 = vmatprep.subr.mxu0 0.0
  %683 = vmatpush2.msra.mxu0 0.0
  %684 = vmatprep.subr.mxu0 0.0
  %685 = vmatpush2.msra.mxu0 0.0
  %686 = vmatprep.subr.mxu0 0.0
  %687 = vmatpush2.msra.mxu0 0.0
  %688 = vmatprep.subr.mxu0 0.0
  %689 = vmatpush2.msra.mxu0 0.0
  %690 = vmatprep.subr.mxu0 0.0
  %691 = vmatpush2.msra.mxu0 0.0
  %692 = vmatprep.subr.mxu0 0.0
  %693 = vmatpush2.msra.mxu0 0.0
  %694 = vmatprep.subr.mxu0 0.0
  %695 = vmatpush2.msra.mxu0 0.0
  %696 = vmatprep.mubr.f32.mxu0 0.0
  %697 = vmatmul.mubr.f32.gmra.mxu0 %v627
  %v698 = vpop.f32.mrf.mxu0
  %v699 = vadd.f32 0.0, %v698
  %v700 = vpop.f32.mrf.mxu0
  %701 = vmatprep.mubr.f32.mxu0 0.0
  %702 = vmatmul.mubr.f32.gmra.mxu0 %v630
  %v703 = vpop.f32.mrf.mxu0
  %v704 = vadd.f32 0.0, %v703
  %v705 = vpop.f32.mrf.mxu0
  %706 = vdwg.mxu0
  %v707 = vrcp.pop %v614
  %v708 = vrcp.pop %v617
  %v709 = vmul.f32 %v699, %v707
  %v710 = vmul.f32 %v704, %v708
  %vm711 = vcmp.gt.f32.partialorder %v709, 0.0
  %vm712 = vcmp.gt.f32.partialorder %v710, 0.0
  %v713 = vmul.f32 %v709, 1.442695
  %v714 = vpow.pop %v713
  %v715 = vmul.f32 %v710, 1.442695
  %v716 = vpow.pop %v715
  %v717 = vsub.f32 %v714, 1.0
  %v718 = vsub.f32 %v716, 1.0
  %v719 = vsel %vm711, %v709, %v717
  %v720 = vsel %vm712, %v710, %v718
  %v721 = vmul.f32 %v719, 0.5
  %v722 = vmul.f32 %v720, 0.5
  %v723 = vadd.f32 %v497, %v721
  %v724 = vadd.f32 %v498, %v722
  %725 = vst.msk [vmem:[%s6] sm:$0xff] %vm34, %v723
  %726 = vst.msk [vmem:[%s6 + $0x8] sm:$0xff] %vm34, %v724
  // Predicated region
  $region26: #{tpu_custom_call.1} parent=0 // pred_check
    _
  $region27: #{tpu_custom_call.1} parent=0 // pred_check_branch
    %728 = sbr.rel (0) target = $region29
  $region28: #{tpu_custom_call.1} parent=0 // pred_region
    _
  $region29: #{tpu_custom_call.1} parent=0 // pred_fallthru
    _
  // Predicated region
  $region30: #{tpu_custom_call.1} parent=0 // pred_check
    _
  $region31: #{tpu_custom_call.1} parent=0 // pred_check_branch
    %730 = sbr.rel (0) target = $region33
  $region32: #{tpu_custom_call.1} parent=0 // pred_region
    _
  $region33: #{tpu_custom_call.1} parent=0 // pred_fallthru
    _

</llo_original>
